<compile_context>
chip_gen: v6e
topology: v6e:2x2x1
jax: 0.10.0
libtpu: 0.0.40
codegen_flags: <defaults>
</compile_context>

<pallas_src>
import functools

import jax
import jax.numpy as jnp
from jax.experimental import pallas as pl
from jax.experimental.pallas import tpu as pltpu


def _density_kernel(params_ref, x_ref, w1t_ref, b1_ref, w2_ref, o_ref, *, p_blk, n_mc):
    """Single grid step covering ALL interior points.

    params_ref: (2,) f32 SMEM        -> [scale = V/N, b2]
    x_ref     : (F, p_blk*N) bf16    transposed features, MC samples of all
                                     points concatenated on the lane axis
    w1t_ref   : (H, F) bf16          pre-transposed first-layer weights
    b1_ref    : (H, 1) f32           first-layer bias (column)
    w2_ref    : (H, 1) f32           second-layer weights (column)
    o_ref     : (1, out_lanes) f32   rho packed lane-dense (lanes 0..p_blk-1)
    """
    scale = params_ref[0]
    b2 = params_ref[1]
    H = w1t_ref.shape[0]
    L = x_ref.shape[1]

    # One batched MXU matmul for every point: (H,F)@(F, p_blk*N) -> (H,L), f32 acc.
    pre = jnp.dot(w1t_ref[...], x_ref[...], preferred_element_type=jnp.float32)

    # Hoisted (single) lane-broadcasts of the bias / second-layer weight columns.
    b1b = jnp.broadcast_to(b1_ref[...], (H, L))
    w2b = jnp.broadcast_to(w2_ref[...], (H, L))

    h = jnp.tanh(pre + b1b)                                # (H, L) f32, EUP on full vregs
    # Width-1 second layer: VPU multiply + XLU sublane reduction (no MXU waste).
    logits = jnp.sum(w2b * h, axis=0, keepdims=True)       # (1, L)
    f = jnp.exp(logits + b2)                               # (1, L), exp once on full tile

    # Per-point Monte-Carlo sums on static, vreg-aligned 128-lane segments.
    cols = []
    for p in range(p_blk):
        seg = f[:, p * n_mc:(p + 1) * n_mc]                # (1, n_mc), lane-aligned
        cols.append(jnp.sum(seg, axis=-1, keepdims=True))  # (1, 1)
    pad = o_ref.shape[-1] - p_blk
    if pad > 0:
        cols.append(jnp.zeros((1, pad), jnp.float32))
    rho = scale * jnp.concatenate(cols, axis=-1)           # (1, out_lanes)
    o_ref[...] = rho.astype(o_ref.dtype)                   # single lane-dense store


def density_forward(x_t, w1, b1, w2, b2, volume):
    """x_t: (P, F, N) f32 transposed features.  Returns rho: (P,) f32."""
    P, F, N = x_t.shape
    H = w1.shape[1]
    L = P * N
    assert N % 128 == 0, "MC sample count must be a multiple of 128 (lane width)"
    assert P <= 128, "lane-dense output packing assumes <= 128 points per call"
    out_lanes = pl.cdiv(P, 128) * 128

    # Runtime scalars through SMEM: no device->host sync, safe under jit,
    # no recompiles when volume / N / b2 change.
    params = jnp.stack([
        jnp.asarray(volume / N, jnp.float32),
        jnp.asarray(b2, jnp.float32).reshape(()),
    ])

    # Repack: all points' MC samples concatenated on the LANE axis; bf16 inputs
    # for the MXU (halves the x DMA), f32 accumulation inside the kernel.
    x2 = jnp.transpose(x_t, (1, 0, 2)).reshape(F, L).astype(jnp.bfloat16)  # (F, L)
    w1t = jnp.asarray(w1, jnp.float32).T.astype(jnp.bfloat16)              # (H, F)
    b1c = jnp.asarray(b1, jnp.float32).reshape(H, 1)                       # (H, 1)
    w2c = jnp.asarray(w2, jnp.float32).reshape(H, 1)                       # (H, 1)

    out = pl.pallas_call(
        functools.partial(_density_kernel, p_blk=P, n_mc=N),
        out_shape=jax.ShapeDtypeStruct((1, out_lanes), jnp.float32),
        grid=(1,),  # single step: per-step pipeline overhead dominates at this size
        in_specs=[
            pl.BlockSpec(memory_space=pltpu.MemorySpace.SMEM),  # [scale, b2]
            pl.BlockSpec((F, L), lambda i: (0, 0)),             # packed features
            pl.BlockSpec((H, F), lambda i: (0, 0)),             # W1^T
            pl.BlockSpec((H, 1), lambda i: (0, 0)),             # b1 (column)
            pl.BlockSpec((H, 1), lambda i: (0, 0)),             # w2 (column)
        ],
        out_specs=pl.BlockSpec((1, out_lanes), lambda i: (0, 0)),
        compiler_params=pltpu.CompilerParams(dimension_semantics=("arbitrary",)),
    )(params, x2, w1t, b1c, w2c)

    return out[0, :P]


def density_reference(x_t, w1, b1, w2, b2, volume):
    """Pure-JAX f32 reference of the same forward.  x_t: (P, F, N)."""
    h = jnp.tanh(jnp.einsum("pfn,fh->pnh", x_t, w1) + b1)          # (P, N, H)
    f = jnp.exp(jnp.einsum("pnh,h->pn", h, w2[:, 0]) + b2[0, 0])   # (P, N)
    return (volume / x_t.shape[-1]) * jnp.sum(f, axis=-1)


if __name__ == "__main__":
    P = 8        # nr_points (interior spatial points)
    N = 128      # montecarlo_points (velocity samples per point)
    F = 8        # features: x, y, z, vx, vy, vz, t, zero-pad
    H = 32       # hidden width of synthetic f_alpha
    VMAX = 5.0
    T = 0.5
    volume = (2.0 * VMAX) ** 3  # velocity-space integration volume

    key = jax.random.PRNGKey(0)
    k_pts, k_vel, k_w1, k_b1, k_w2, k_b2 = jax.random.split(key, 6)

    # Geometry.sample_interior -> deterministic uniform points in [0,1]^3
    pts = jax.random.uniform(k_pts, (P, 3), dtype=jnp.float32)
    # MonteCarlo velocity samples in [-VMAX, VMAX]^3
    vel = jax.random.uniform(
        k_vel, (N, 3), dtype=jnp.float32, minval=-VMAX, maxval=VMAX
    )

    # Pack TRANSPOSED features (MC samples on the lane axis):
    #   X^T[p, :, n] = [rx_p, ry_p, rz_p, vx_n, vy_n, vz_n, t, 0]
    x_t = jnp.zeros((P, F, N), dtype=jnp.float32)
    x_t = x_t.at[:, 0:3, :].set(pts[:, :, None])
    x_t = x_t.at[:, 3:6, :].set(vel.T[None, :, :])
    x_t = x_t.at[:, 6, :].set(T)

    # Synthetic f_alpha MLP parameters (deterministic init)
    w1 = 0.3 * jax.random.normal(k_w1, (F, H), dtype=jnp.float32)
    w1 = w1.at[F - 1, :].set(0.0)  # padded feature contributes nothing
    b1 = 0.1 * jax.random.normal(k_b1, (1, H), dtype=jnp.float32)
    w2 = 0.3 * jax.random.normal(k_w2, (H, 1), dtype=jnp.float32)
    b2 = 0.1 * jax.random.normal(k_b2, (1, 1), dtype=jnp.float32)

    rho = density_forward(x_t, w1, b1, w2, b2, volume)
    jax.block_until_ready(rho)

    ref = density_reference(x_t, w1, b1, w2, b2, volume)
    assert rho.shape == (P,), rho.shape
    # bf16 MXU inputs with f32 accumulation vs f32 reference
    assert jnp.allclose(rho, ref, rtol=2e-2, atol=2e-2), (rho, ref)

    print("KERNEL_OK")
</pallas_src>

<mosaic_0001>
module attributes {stable_mosaic.version = 11 : i64} {
  func.func @_density_kernel(%arg0: i32, %arg1: memref<2xf32, #tpu.memory_space<smem>>, %arg2: memref<8x1024xbf16, #tpu.memory_space<vmem>>, %arg3: memref<32x8xbf16, #tpu.memory_space<vmem>>, %arg4: memref<32x1xf32, #tpu.memory_space<vmem>>, %arg5: memref<32x1xf32, #tpu.memory_space<vmem>>, %arg6: memref<1x128xf32, #tpu.memory_space<vmem>>) attributes {dimension_semantics = [#tpu.dimension_semantics<arbitrary>], iteration_bounds = array<i64: 1>, scalar_prefetch = 0 : i64, scratch_operands = 0 : i64, tpu.core_type = #tpu.core_type<tc>, window_params = [{transform_indices = @transform_0, window_bounds = array<i64: 2>}, {pipeline_mode = #tpu.pipeline_mode<synchronous>, transform_indices = @transform_1, window_bounds = array<i64: 8, 1024>}, {pipeline_mode = #tpu.pipeline_mode<synchronous>, transform_indices = @transform_2, window_bounds = array<i64: 32, 8>}, {pipeline_mode = #tpu.pipeline_mode<synchronous>, transform_indices = @transform_3, window_bounds = array<i64: 32, 1>}, {pipeline_mode = #tpu.pipeline_mode<synchronous>, transform_indices = @transform_4, window_bounds = array<i64: 32, 1>}, {pipeline_mode = #tpu.pipeline_mode<synchronous>, transform_indices = @transform_5, window_bounds = array<i64: 1, 128>}]} {
    %c0 = arith.constant 0 : index
    %0 = memref.load %arg1[%c0] : memref<2xf32, #tpu.memory_space<smem>>
    %c1 = arith.constant 1 : index
    %1 = memref.load %arg1[%c1] : memref<2xf32, #tpu.memory_space<smem>>
    %c0_0 = arith.constant 0 : index
    %c0_1 = arith.constant 0 : index
    %2 = vector.load %arg3[%c0_0, %c0_1] : memref<32x8xbf16, #tpu.memory_space<vmem>>, vector<32x8xbf16>
    %c0_2 = arith.constant 0 : index
    %c0_3 = arith.constant 0 : index
    %3 = vector.load %arg2[%c0_2, %c0_3] : memref<8x1024xbf16, #tpu.memory_space<vmem>>, vector<8x1024xbf16>
    %cst = arith.constant dense<0.000000e+00> : vector<32x1024xf32>
    %4 = tpu.matmul %2, %3, %cst {dimension_numbers = #tpu.dot_dimension_numbers<[1], [0], [0], [1], [0, 0, 1, 1], [], []>} : vector<32x8xbf16>, vector<8x1024xbf16>, vector<32x1024xf32> -> vector<32x1024xf32>
    %c0_4 = arith.constant 0 : index
    %c0_5 = arith.constant 0 : index
    %5 = vector.load %arg4[%c0_4, %c0_5] : memref<32x1xf32, #tpu.memory_space<vmem>>, vector<32x1xf32>
    %6 = vector.shape_cast %5 : vector<32x1xf32> to vector<32x1xf32>
    %7 = vector.broadcast %6 : vector<32x1xf32> to vector<32x1024xf32>
    %c0_6 = arith.constant 0 : index
    %c0_7 = arith.constant 0 : index
    %8 = vector.load %arg5[%c0_6, %c0_7] : memref<32x1xf32, #tpu.memory_space<vmem>>, vector<32x1xf32>
    %9 = vector.shape_cast %8 : vector<32x1xf32> to vector<32x1xf32>
    %10 = vector.broadcast %9 : vector<32x1xf32> to vector<32x1024xf32>
    %11 = arith.addf %4, %7 : vector<32x1024xf32>
    %12 = math.tanh %11 : vector<32x1024xf32>
    %13 = arith.mulf %10, %12 : vector<32x1024xf32>
    %cst_8 = arith.constant dense<0.000000e+00> : vector<1024xf32>
    %14 = vector.multi_reduction <add>, %13, %cst_8 [0] : vector<32x1024xf32> to vector<1024xf32>
    %15 = vector.shape_cast %14 : vector<1024xf32> to vector<1x1024xf32>
    %16 = vector.broadcast %1 : f32 to vector<1x1024xf32>
    %17 = arith.addf %15, %16 : vector<1x1024xf32>
    %18 = math.exp %17 : vector<1x1024xf32>
    %19 = vector.extract_strided_slice %18 {offsets = [0, 0], sizes = [1, 128], strides = [1, 1]} : vector<1x1024xf32> to vector<1x128xf32>
    %cst_9 = arith.constant dense<0.000000e+00> : vector<1xf32>
    %20 = vector.multi_reduction <add>, %19, %cst_9 [1] : vector<1x128xf32> to vector<1xf32>
    %21 = vector.shape_cast %20 : vector<1xf32> to vector<1x1xf32>
    %22 = vector.extract_strided_slice %18 {offsets = [0, 128], sizes = [1, 128], strides = [1, 1]} : vector<1x1024xf32> to vector<1x128xf32>
    %cst_10 = arith.constant dense<0.000000e+00> : vector<1xf32>
    %23 = vector.multi_reduction <add>, %22, %cst_10 [1] : vector<1x128xf32> to vector<1xf32>
    %24 = vector.shape_cast %23 : vector<1xf32> to vector<1x1xf32>
    %25 = vector.extract_strided_slice %18 {offsets = [0, 256], sizes = [1, 128], strides = [1, 1]} : vector<1x1024xf32> to vector<1x128xf32>
    %cst_11 = arith.constant dense<0.000000e+00> : vector<1xf32>
    %26 = vector.multi_reduction <add>, %25, %cst_11 [1] : vector<1x128xf32> to vector<1xf32>
    %27 = vector.shape_cast %26 : vector<1xf32> to vector<1x1xf32>
    %28 = vector.extract_strided_slice %18 {offsets = [0, 384], sizes = [1, 128], strides = [1, 1]} : vector<1x1024xf32> to vector<1x128xf32>
    %cst_12 = arith.constant dense<0.000000e+00> : vector<1xf32>
    %29 = vector.multi_reduction <add>, %28, %cst_12 [1] : vector<1x128xf32> to vector<1xf32>
    %30 = vector.shape_cast %29 : vector<1xf32> to vector<1x1xf32>
    %31 = vector.extract_strided_slice %18 {offsets = [0, 512], sizes = [1, 128], strides = [1, 1]} : vector<1x1024xf32> to vector<1x128xf32>
    %cst_13 = arith.constant dense<0.000000e+00> : vector<1xf32>
    %32 = vector.multi_reduction <add>, %31, %cst_13 [1] : vector<1x128xf32> to vector<1xf32>
    %33 = vector.shape_cast %32 : vector<1xf32> to vector<1x1xf32>
    %34 = vector.extract_strided_slice %18 {offsets = [0, 640], sizes = [1, 128], strides = [1, 1]} : vector<1x1024xf32> to vector<1x128xf32>
    %cst_14 = arith.constant dense<0.000000e+00> : vector<1xf32>
    %35 = vector.multi_reduction <add>, %34, %cst_14 [1] : vector<1x128xf32> to vector<1xf32>
    %36 = vector.shape_cast %35 : vector<1xf32> to vector<1x1xf32>
    %37 = vector.extract_strided_slice %18 {offsets = [0, 768], sizes = [1, 128], strides = [1, 1]} : vector<1x1024xf32> to vector<1x128xf32>
    %cst_15 = arith.constant dense<0.000000e+00> : vector<1xf32>
    %38 = vector.multi_reduction <add>, %37, %cst_15 [1] : vector<1x128xf32> to vector<1xf32>
    %39 = vector.shape_cast %38 : vector<1xf32> to vector<1x1xf32>
    %40 = vector.extract_strided_slice %18 {offsets = [0, 896], sizes = [1, 128], strides = [1, 1]} : vector<1x1024xf32> to vector<1x128xf32>
    %cst_16 = arith.constant dense<0.000000e+00> : vector<1xf32>
    %41 = vector.multi_reduction <add>, %40, %cst_16 [1] : vector<1x128xf32> to vector<1xf32>
    %42 = vector.shape_cast %41 : vector<1xf32> to vector<1x1xf32>
    %cst_17 = arith.constant 0.000000e+00 : f32
    %43 = vector.broadcast %cst_17 : f32 to vector<1x120xf32>
    %44 = tpu.concatenate %21, %24, %27, %30, %33, %36, %39, %42, %43 in 1 : vector<1x1xf32>, vector<1x1xf32>, vector<1x1xf32>, vector<1x1xf32>, vector<1x1xf32>, vector<1x1xf32>, vector<1x1xf32>, vector<1x1xf32>, vector<1x120xf32> -> vector<1x128xf32>
    %45 = vector.broadcast %0 : f32 to vector<1x128xf32>
    %46 = arith.mulf %45, %44 : vector<1x128xf32>
    %c0_18 = arith.constant 0 : index
    %c0_19 = arith.constant 0 : index
    %47 = vector.load %arg6[%c0_18, %c0_19] : memref<1x128xf32, #tpu.memory_space<vmem>>, vector<1x128xf32>
    tpu.vector_store %arg6[%c0_18, %c0_19], %46 {strides = array<i32>} : memref<1x128xf32, #tpu.memory_space<vmem>>, vector<1x128xf32>,
    return
  }
  func.func @transform_0(%arg0: i32) -> i32 {
    %c0_i32 = arith.constant 0 : i32
    %c0_i32_0 = arith.constant 0 : i32
    return %c0_i32 : i32
  }
  func.func @transform_1(%arg0: i32) -> (i32, i32) {
    %c0_i32 = arith.constant 0 : i32
    %c0_i32_0 = arith.constant 0 : i32
    %c0_i32_1 = arith.constant 0 : i32
    return %c0_i32, %c0_i32_0 : i32, i32
  }
  func.func @transform_2(%arg0: i32) -> (i32, i32) {
    %c0_i32 = arith.constant 0 : i32
    %c0_i32_0 = arith.constant 0 : i32
    %c0_i32_1 = arith.constant 0 : i32
    return %c0_i32, %c0_i32_0 : i32, i32
  }
  func.func @transform_3(%arg0: i32) -> (i32, i32) {
    %c0_i32 = arith.constant 0 : i32
    %c0_i32_0 = arith.constant 0 : i32
    %c0_i32_1 = arith.constant 0 : i32
    return %c0_i32, %c0_i32_0 : i32, i32
  }
  func.func @transform_4(%arg0: i32) -> (i32, i32) {
    %c0_i32 = arith.constant 0 : i32
    %c0_i32_0 = arith.constant 0 : i32
    %c0_i32_1 = arith.constant 0 : i32
    return %c0_i32, %c0_i32_0 : i32, i32
  }
  func.func @transform_5(%arg0: i32) -> (i32, i32) {
    %c0_i32 = arith.constant 0 : i32
    %c0_i32_0 = arith.constant 0 : i32
    %c0_i32_1 = arith.constant 0 : i32
    return %c0_i32, %c0_i32_0 : i32, i32
  }
}

</mosaic_0001>

<llo_original>
// kernel: tpu_custom_call.1
$region0: #{tpu_custom_call.1}
  #allocation0 [shape = 'u32[]', space=smem, size = 0x4, offset = 0x4, fixed_abs, tag = 'smem constant byte address 0x4 - core index']
  #allocation1 [shape = 'u32[144,128]{1,0:T(1,128)}', space=vmem, size = 0x12000, scoped, tag = 'internal scratch']
  %s0 = inlined_call_operand.vmem [shape: f32[2], index: 0, kind: input, shape index: {}]
  %s1 = inlined_call_operand.vmem [shape: bf16[8,1024], index: 1, kind: input, shape index: {}]
  %s2 = inlined_call_operand.vmem [shape: bf16[32,8], index: 2, kind: input, shape index: {}]
  %s3 = inlined_call_operand.vmem [shape: f32[32,1], index: 3, kind: input, shape index: {}]
  %s4 = inlined_call_operand.vmem [shape: f32[32,1], index: 4, kind: input, shape index: {}]
  %s5 = inlined_call_operand.hbm [shape: f32[1,128], index: 5, kind: output, shape index: {}]
  %s6 = sld [smem:[#allocation0]]
  $region34: #{tpu_custom_call.1} parent=0
    _
  %s8 = ssub.s32 1, %s6
  %s9 = scalar_select 0, %s8, %s6
  $region1: #{tpu_custom_call.1} parent=0
    #allocation2 [shape = 'u8[512]{0}', space=smem, size = 0x200, scoped, tag = 'input window, operand 0, single buffered']
    #allocation3 [shape = 's32[1]{0}', space=sflag, size = 0x4, scoped, tag = 'scoped memory for tpu_custom_call.1']
    #allocation4 [shape = 's32[1]{0}', space=sflag, size = 0x4, scoped, tag = 'scoped memory for tpu_custom_call.1']
    #allocation5 [shape = 'u8[512]{0}', space=vmem, size = 0x400, scoped, tag = 'output window, operand 0, single buffered']
    %10 = vsyncpa [#allocation4], 0
    %11 = vsyncpa [#allocation3], 0
    // Predicated region
    $region2: #{tpu_custom_call.1} parent=1 // pred_check
      _
    $region3: #{tpu_custom_call.1} parent=1 // pred_check_branch
      %13 = sbr.rel (0) target = $region5
    $region4: #{tpu_custom_call.1} parent=1 // pred_region
      %s15 = ssub.s32 16, 16
      %16 = vsyncadd [#allocation4], %s15
      %s18 = sshll.u32 %s0, 4
      %s19 = int_to_ptr.vmem [resolvable:$true] %s18
      %21 = dma.vmem_to_smem %s19, 16, [#allocation2], [#allocation4]
    $region5: #{tpu_custom_call.1} parent=1 // pred_fallthru
      _
    // Predicated region
    $region6: #{tpu_custom_call.1} parent=1 // pred_check
      _
    $region7: #{tpu_custom_call.1} parent=1 // pred_check_branch
      %23 = sbr.rel (0) target = $region9
    $region8: #{tpu_custom_call.1} parent=1 // pred_region
      _
    $region9: #{tpu_custom_call.1} parent=1 // pred_fallthru
      _
    // Predicated region
    $region10: #{tpu_custom_call.1} parent=1 // pred_check
      _
    $region11: #{tpu_custom_call.1} parent=1 // pred_check_branch
      %25 = sbr.rel (0) target = $region13
    $region12: #{tpu_custom_call.1} parent=1 // pred_region
      _
    $region13: #{tpu_custom_call.1} parent=1 // pred_fallthru
      _
    // Predicated region
    $region14: #{tpu_custom_call.1} parent=1 // pred_check
      _
    $region15: #{tpu_custom_call.1} parent=1 // pred_check_branch
      %27 = sbr.rel (0) target = $region17
    $region16: #{tpu_custom_call.1} parent=1 // pred_region
      _
    $region17: #{tpu_custom_call.1} parent=1 // pred_fallthru
      _
    // Predicated region
    $region18: #{tpu_custom_call.1} parent=1 // pred_check
      _
    $region19: #{tpu_custom_call.1} parent=1 // pred_check_branch
      %29 = sbr.rel (0) target = $region21
    $region20: #{tpu_custom_call.1} parent=1 // pred_region
      _
    $region21: #{tpu_custom_call.1} parent=1 // pred_fallthru
      _
    // Predicated region
    $region22: #{tpu_custom_call.1} parent=1 // pred_check
      _
    $region23: #{tpu_custom_call.1} parent=1 // pred_check_branch
      %31 = sbr.rel (0) target = $region25
    $region24: #{tpu_custom_call.1} parent=1 // pred_region
      %32 = dma.done [#allocation4], 16
    $region25: #{tpu_custom_call.1} parent=1 // pred_fallthru
      _
    %33 = sfence
    %s35 = sld [smem:[#allocation2]]
    %s36 = sld [smem:[#allocation2 + $0x1]]
    %v37 = vld [vmem:[%s2] sm:$0xf]
    %v38 = vld [vmem:[%s2 + $0x4] sm:$0xf]
    %v39 = vld [vmem:[%s2 + $0x8] sm:$0xf]
    %v40 = vld [vmem:[%s2 + $0xc] sm:$0xf]
    %v41 = vld [vmem:[%s1] sm:$0xff]
    %v42 = vld [vmem:[%s1 + $0x8] sm:$0xff]
    %v43 = vld [vmem:[%s1 + $0x10] sm:$0xff]
    %v44 = vld [vmem:[%s1 + $0x18] sm:$0xff]
    %v45 = vld [vmem:[%s3] sm:$0xff]
    %v46 = vld [vmem:[%s3 + $0x8] sm:$0xff]
    %v47 = vld [vmem:[%s3 + $0x10] sm:$0xff]
    %v48 = vld [vmem:[%s3 + $0x18] sm:$0xff]
    %50 = vset.pattern.permute.xlu0 0
    %51 = vperm.xlu0 %50, %v45
    %v52 = vpop.permute.xlu0 %51
    %55 = vset.pattern.permute.xlu0 0
    %56 = vperm.xlu0 %55, %v46
    %v57 = vpop.permute.xlu0 %56
    %60 = vset.pattern.permute.xlu0 0
    %61 = vperm.xlu0 %60, %v47
    %v62 = vpop.permute.xlu0 %61
    %65 = vset.pattern.permute.xlu0 0
    %66 = vperm.xlu0 %65, %v48
    %v67 = vpop.permute.xlu0 %66
    %v69 = vld [vmem:[%s4] sm:$0xff]
    %v70 = vld [vmem:[%s4 + $0x8] sm:$0xff]
    %v71 = vld [vmem:[%s4 + $0x10] sm:$0xff]
    %v72 = vld [vmem:[%s4 + $0x18] sm:$0xff]
    %74 = vset.pattern.permute.xlu0 0
    %75 = vperm.xlu0 %74, %v69
    %v76 = vpop.permute.xlu0 %75
    %79 = vset.pattern.permute.xlu0 0
    %80 = vperm.xlu0 %79, %v70
    %v81 = vpop.permute.xlu0 %80
    %84 = vset.pattern.permute.xlu0 0
    %85 = vperm.xlu0 %84, %v71
    %v86 = vpop.permute.xlu0 %85
    %89 = vset.pattern.permute.xlu0 0
    %90 = vperm.xlu0 %89, %v72
    %v91 = vpop.permute.xlu0 %90
    %v97 = vunpack.c.l.b16 %v37
    %v98 = vunpack.c.l.b16 %v38
    %v99 = vunpack.c.l.b16 %v39
    %v100 = vunpack.c.l.b16 %v40
    %v101 = vpack.c.b16 %v98, %v97
    %v102 = vpack.c.b16 %v100, %v99
    %v107 = vunpack.c.l.b16 %v41
    %v108 = vunpack.c.h.b16 %v41
    %v109 = vunpack.c.l.b16 %v42
    %v110 = vunpack.c.h.b16 %v42
    %v111 = vunpack.c.l.b16 %v43
    %v112 = vunpack.c.h.b16 %v43
    %v113 = vunpack.c.l.b16 %v44
    %v114 = vunpack.c.h.b16 %v44
    %v115 = vpack.c.b16 %v107, %v107
    %v116 = vpack.c.b16 %v108, %v108
    %v117 = vpack.c.b16 %v109, %v109
    %v118 = vpack.c.b16 %v110, %v110
    %v119 = vpack.c.b16 %v111, %v111
    %v120 = vpack.c.b16 %v112, %v112
    %v121 = vpack.c.b16 %v113, %v113
    %v122 = vpack.c.b16 %v114, %v114
    %vm123 = vcmask 64512
    %v125 = vsel %vm123, %v101, 0
    %v128 = vsel %vm123, %v102, 0
    %vm130 = vcmask 1043456
    %v132 = vsel %vm130, %v115, 0
    %v135 = vsel %vm130, %v116, 0
    %v138 = vsel %vm130, %v117, 0
    %v141 = vsel %vm130, %v118, 0
    %v144 = vsel %vm130, %v119, 0
    %v147 = vsel %vm130, %v120, 0
    %v150 = vsel %vm130, %v121, 0
    %v153 = vsel %vm130, %v122, 0
    %155 = vmatprep.subr.bf16.mxu0 0
    %156 = vmatpush1.bf16.msra.mxu0 0
    %157 = vmatprep.subr.bf16.mxu0 0
    %158 = vmatpush1.bf16.msra.mxu0 0
    %159 = vmatprep.subr.bf16.mxu0 0
    %160 = vmatpush1.bf16.msra.mxu0 0
    %161 = vmatprep.subr.bf16.mxu0 0
    %162 = vmatpush1.bf16.msra.mxu0 0
    %163 = vmatprep.subr.bf16.mxu0 0
    %164 = vmatpush1.bf16.msra.mxu0 0
    %165 = vmatprep.subr.bf16.mxu0 0
    %166 = vmatpush1.bf16.msra.mxu0 0
    %167 = vmatprep.subr.bf16.mxu0 0
    %168 = vmatpush1.bf16.msra.mxu0 0
    %169 = vmatprep.subr.bf16.mxu0 %v135
    %170 = vmatpush1.bf16.msra.mxu0 %v132
    %171 = vmatprep.subr.bf16.mxu0 0
    %172 = vmatpush2.bf16.msra.mxu0 0
    %173 = vmatprep.subr.bf16.mxu0 0
    %174 = vmatpush2.bf16.msra.mxu0 0
    %175 = vmatprep.subr.bf16.mxu0 0
    %176 = vmatpush2.bf16.msra.mxu0 0
    %177 = vmatprep.subr.bf16.mxu0 0
    %178 = vmatpush2.bf16.msra.mxu0 0
    %179 = vmatprep.subr.bf16.mxu0 0
    %180 = vmatpush2.bf16.msra.mxu0 0
    %181 = vmatprep.subr.bf16.mxu0 0
    %182 = vmatpush2.bf16.msra.mxu0 0
    %183 = vmatprep.subr.bf16.mxu0 0
    %184 = vmatpush2.bf16.msra.mxu0 0
    %185 = vmatprep.subr.bf16.mxu0 0
    %186 = vmatpush2.bf16.msra.mxu0 0
    %187 = vmatprep.mubr.bf16.mxu0 0
    %188 = vmatmul.mubr.bf16.gmra.mxu0 %v125
    %v189 = vpop.f32.mrf.mxu0
    %v190 = vadd.f32 %v52, %v189
    %v191 = vpop.f32.mrf.mxu0
    %v192 = vadd.f32 %v52, %v191
    %v193 = vpop.f32.mrf.mxu0
    %v194 = vadd.f32 %v57, %v193
    %v195 = vpop.f32.mrf.mxu0
    %v196 = vadd.f32 %v57, %v195
    %197 = vmatprep.mubr.bf16.mxu0 0
    %198 = vmatmul.mubr.bf16.gmra.mxu0 %v128
    %v199 = vpop.f32.mrf.mxu0
    %v200 = vadd.f32 %v62, %v199
    %v201 = vpop.f32.mrf.mxu0
    %v202 = vadd.f32 %v62, %v201
    %v203 = vpop.f32.mrf.mxu0
    %v204 = vadd.f32 %v67, %v203
    %v205 = vpop.f32.mrf.mxu0
    %v206 = vadd.f32 %v67, %v205
    %207 = vdwg.mxu0
    %208 = vmatprep.subr.bf16.mxu0 0
    %209 = vmatpush1.bf16.msra.mxu0 0
    %210 = vmatprep.subr.bf16.mxu0 0
    %211 = vmatpush1.bf16.msra.mxu0 0
    %212 = vmatprep.subr.bf16.mxu0 0
    %213 = vmatpush1.bf16.msra.mxu0 0
    %214 = vmatprep.subr.bf16.mxu0 0
    %215 = vmatpush1.bf16.msra.mxu0 0
    %216 = vmatprep.subr.bf16.mxu0 0
    %217 = vmatpush1.bf16.msra.mxu0 0
    %218 = vmatprep.subr.bf16.mxu0 0
    %219 = vmatpush1.bf16.msra.mxu0 0
    %220 = vmatprep.subr.bf16.mxu0 0
    %221 = vmatpush1.bf16.msra.mxu0 0
    %222 = vmatprep.subr.bf16.mxu0 %v141
    %223 = vmatpush1.bf16.msra.mxu0 %v138
    %224 = vmatprep.subr.bf16.mxu0 0
    %225 = vmatpush2.bf16.msra.mxu0 0
    %226 = vmatprep.subr.bf16.mxu0 0
    %227 = vmatpush2.bf16.msra.mxu0 0
    %228 = vmatprep.subr.bf16.mxu0 0
    %229 = vmatpush2.bf16.msra.mxu0 0
    %230 = vmatprep.subr.bf16.mxu0 0
    %231 = vmatpush2.bf16.msra.mxu0 0
    %232 = vmatprep.subr.bf16.mxu0 0
    %233 = vmatpush2.bf16.msra.mxu0 0
    %234 = vmatprep.subr.bf16.mxu0 0
    %235 = vmatpush2.bf16.msra.mxu0 0
    %236 = vmatprep.subr.bf16.mxu0 0
    %237 = vmatpush2.bf16.msra.mxu0 0
    %238 = vmatprep.subr.bf16.mxu0 0
    %239 = vmatpush2.bf16.msra.mxu0 0
    %240 = vmatprep.mubr.bf16.mxu0 0
    %241 = vmatmul.mubr.bf16.gmra.mxu0 %v125
    %v242 = vpop.f32.mrf.mxu0
    %v243 = vadd.f32 %v52, %v242
    %v244 = vpop.f32.mrf.mxu0
    %v245 = vadd.f32 %v52, %v244
    %v246 = vpop.f32.mrf.mxu0
    %v247 = vadd.f32 %v57, %v246
    %v248 = vpop.f32.mrf.mxu0
    %v249 = vadd.f32 %v57, %v248
    %250 = vmatprep.mubr.bf16.mxu0 0
    %251 = vmatmul.mubr.bf16.gmra.mxu0 %v128
    %v252 = vpop.f32.mrf.mxu0
    %v253 = vadd.f32 %v62, %v252
    %v254 = vpop.f32.mrf.mxu0
    %v255 = vadd.f32 %v62, %v254
    %v256 = vpop.f32.mrf.mxu0
    %v257 = vadd.f32 %v67, %v256
    %v258 = vpop.f32.mrf.mxu0
    %v259 = vadd.f32 %v67, %v258
    %260 = vdwg.mxu0
    %261 = vmatprep.subr.bf16.mxu0 0
    %262 = vmatpush1.bf16.msra.mxu0 0
    %263 = vmatprep.subr.bf16.mxu0 0
    %264 = vmatpush1.bf16.msra.mxu0 0
    %265 = vmatprep.subr.bf16.mxu0 0
    %266 = vmatpush1.bf16.msra.mxu0 0
    %267 = vmatprep.subr.bf16.mxu0 0
    %268 = vmatpush1.bf16.msra.mxu0 0
    %269 = vmatprep.subr.bf16.mxu0 0
    %270 = vmatpush1.bf16.msra.mxu0 0
    %271 = vmatprep.subr.bf16.mxu0 0
    %272 = vmatpush1.bf16.msra.mxu0 0
    %273 = vmatprep.subr.bf16.mxu0 0
    %274 = vmatpush1.bf16.msra.mxu0 0
    %275 = vmatprep.subr.bf16.mxu0 %v147
    %276 = vmatpush1.bf16.msra.mxu0 %v144
    %277 = vmatprep.subr.bf16.mxu0 0
    %278 = vmatpush2.bf16.msra.mxu0 0
    %279 = vmatprep.subr.bf16.mxu0 0
    %280 = vmatpush2.bf16.msra.mxu0 0
    %281 = vmatprep.subr.bf16.mxu0 0
    %282 = vmatpush2.bf16.msra.mxu0 0
    %283 = vmatprep.subr.bf16.mxu0 0
    %284 = vmatpush2.bf16.msra.mxu0 0
    %285 = vmatprep.subr.bf16.mxu0 0
    %286 = vmatpush2.bf16.msra.mxu0 0
    %287 = vmatprep.subr.bf16.mxu0 0
    %288 = vmatpush2.bf16.msra.mxu0 0
    %289 = vmatprep.subr.bf16.mxu0 0
    %290 = vmatpush2.bf16.msra.mxu0 0
    %291 = vmatprep.subr.bf16.mxu0 0
    %292 = vmatpush2.bf16.msra.mxu0 0
    %293 = vmatprep.mubr.bf16.mxu0 0
    %294 = vmatmul.mubr.bf16.gmra.mxu0 %v125
    %v295 = vpop.f32.mrf.mxu0
    %v296 = vadd.f32 %v52, %v295
    %v297 = vpop.f32.mrf.mxu0
    %v298 = vadd.f32 %v52, %v297
    %v299 = vpop.f32.mrf.mxu0
    %v300 = vadd.f32 %v57, %v299
    %v301 = vpop.f32.mrf.mxu0
    %v302 = vadd.f32 %v57, %v301
    %303 = vmatprep.mubr.bf16.mxu0 0
    %304 = vmatmul.mubr.bf16.gmra.mxu0 %v128
    %v305 = vpop.f32.mrf.mxu0
    %v306 = vadd.f32 %v62, %v305
    %v307 = vpop.f32.mrf.mxu0
    %v308 = vadd.f32 %v62, %v307
    %v309 = vpop.f32.mrf.mxu0
    %v310 = vadd.f32 %v67, %v309
    %v311 = vpop.f32.mrf.mxu0
    %v312 = vadd.f32 %v67, %v311
    %313 = vdwg.mxu0
    %314 = vmatprep.subr.bf16.mxu0 0
    %315 = vmatpush1.bf16.msra.mxu0 0
    %316 = vmatprep.subr.bf16.mxu0 0
    %317 = vmatpush1.bf16.msra.mxu0 0
    %318 = vmatprep.subr.bf16.mxu0 0
    %319 = vmatpush1.bf16.msra.mxu0 0
    %320 = vmatprep.subr.bf16.mxu0 0
    %321 = vmatpush1.bf16.msra.mxu0 0
    %322 = vmatprep.subr.bf16.mxu0 0
    %323 = vmatpush1.bf16.msra.mxu0 0
    %324 = vmatprep.subr.bf16.mxu0 0
    %325 = vmatpush1.bf16.msra.mxu0 0
    %326 = vmatprep.subr.bf16.mxu0 0
    %327 = vmatpush1.bf16.msra.mxu0 0
    %328 = vmatprep.subr.bf16.mxu0 %v153
    %329 = vmatpush1.bf16.msra.mxu0 %v150
    %330 = vmatprep.subr.bf16.mxu0 0
    %331 = vmatpush2.bf16.msra.mxu0 0
    %332 = vmatprep.subr.bf16.mxu0 0
    %333 = vmatpush2.bf16.msra.mxu0 0
    %334 = vmatprep.subr.bf16.mxu0 0
    %335 = vmatpush2.bf16.msra.mxu0 0
    %336 = vmatprep.subr.bf16.mxu0 0
    %337 = vmatpush2.bf16.msra.mxu0 0
    %338 = vmatprep.subr.bf16.mxu0 0
    %339 = vmatpush2.bf16.msra.mxu0 0
    %340 = vmatprep.subr.bf16.mxu0 0
    %341 = vmatpush2.bf16.msra.mxu0 0
    %342 = vmatprep.subr.bf16.mxu0 0
    %343 = vmatpush2.bf16.msra.mxu0 0
    %344 = vmatprep.subr.bf16.mxu0 0
    %345 = vmatpush2.bf16.msra.mxu0 0
    %346 = vmatprep.mubr.bf16.mxu0 0
    %347 = vmatmul.mubr.bf16.gmra.mxu0 %v125
    %v348 = vpop.f32.mrf.mxu0
    %v349 = vadd.f32 %v52, %v348
    %v350 = vpop.f32.mrf.mxu0
    %v351 = vadd.f32 %v52, %v350
    %v352 = vpop.f32.mrf.mxu0
    %v353 = vadd.f32 %v57, %v352
    %v354 = vpop.f32.mrf.mxu0
    %v355 = vadd.f32 %v57, %v354
    %356 = vmatprep.mubr.bf16.mxu0 0
    %357 = vmatmul.mubr.bf16.gmra.mxu0 %v128
    %v358 = vpop.f32.mrf.mxu0
    %v359 = vadd.f32 %v62, %v358
    %v360 = vpop.f32.mrf.mxu0
    %v361 = vadd.f32 %v62, %v360
    %v362 = vpop.f32.mrf.mxu0
    %v363 = vadd.f32 %v67, %v362
    %v364 = vpop.f32.mrf.mxu0
    %v365 = vadd.f32 %v67, %v364
    %366 = vdwg.mxu0
    %v367 = vtanh.pop %v190
    %v368 = vtanh.pop %v192
    %v369 = vtanh.pop %v243
    %v370 = vtanh.pop %v245
    %v371 = vtanh.pop %v296
    %v372 = vtanh.pop %v298
    %v373 = vtanh.pop %v349
    %v374 = vtanh.pop %v351
    %v375 = vtanh.pop %v194
    %v376 = vtanh.pop %v196
    %v377 = vtanh.pop %v247
    %v378 = vtanh.pop %v249
    %v379 = vtanh.pop %v300
    %v380 = vtanh.pop %v302
    %v381 = vtanh.pop %v353
    %v382 = vtanh.pop %v355
    %v383 = vtanh.pop %v200
    %v384 = vtanh.pop %v202
    %v385 = vtanh.pop %v253
    %v386 = vtanh.pop %v255
    %v387 = vtanh.pop %v306
    %v388 = vtanh.pop %v308
    %v389 = vtanh.pop %v359
    %v390 = vtanh.pop %v361
    %v391 = vtanh.pop %v204
    %v392 = vtanh.pop %v206
    %v393 = vtanh.pop %v257
    %v394 = vtanh.pop %v259
    %v395 = vtanh.pop %v310
    %v396 = vtanh.pop %v312
    %v397 = vtanh.pop %v363
    %v398 = vtanh.pop %v365
    %v399 = vmul.f32 %v76, %v367
    %v400 = vmul.f32 %v76, %v368
    %v401 = vmul.f32 %v76, %v369
    %v402 = vmul.f32 %v76, %v370
    %v403 = vmul.f32 %v76, %v371
    %v404 = vmul.f32 %v76, %v372
    %v405 = vmul.f32 %v76, %v373
    %v406 = vmul.f32 %v76, %v374
    %v407 = vmul.f32 %v81, %v375
    %v408 = vmul.f32 %v81, %v376
    %v409 = vmul.f32 %v81, %v377
    %v410 = vmul.f32 %v81, %v378
    %v411 = vmul.f32 %v81, %v379
    %v412 = vmul.f32 %v81, %v380
    %v413 = vmul.f32 %v81, %v381
    %v414 = vmul.f32 %v81, %v382
    %v415 = vmul.f32 %v86, %v383
    %v416 = vmul.f32 %v86, %v384
    %v417 = vmul.f32 %v86, %v385
    %v418 = vmul.f32 %v86, %v386
    %v419 = vmul.f32 %v86, %v387
    %v420 = vmul.f32 %v86, %v388
    %v421 = vmul.f32 %v86, %v389
    %v422 = vmul.f32 %v86, %v390
    %v423 = vmul.f32 %v91, %v391
    %v424 = vmul.f32 %v91, %v392
    %v425 = vmul.f32 %v91, %v393
    %v426 = vmul.f32 %v91, %v394
    %v427 = vmul.f32 %v91, %v395
    %v428 = vmul.f32 %v91, %v396
    %v429 = vmul.f32 %v91, %v397
    %v430 = vmul.f32 %v91, %v398
    %v431 = vadd.f32 %v399, %v407
    %v432 = vadd.f32 %v431, %v415
    %v433 = vadd.f32 %v432, %v423
    %v434 = vrot.slane %v433, 4
    %v435 = vadd.f32 %v433, %v434
    %v436 = vrot.slane %v435, 2
    %v437 = vadd.f32 %v435, %v436
    %v438 = vrot.slane %v437, 1
    %v439 = vadd.f32 %v437, %v438
    %v440 = vadd.f32 %v400, %v408
    %v441 = vadd.f32 %v440, %v416
    %v442 = vadd.f32 %v441, %v424
    %v443 = vrot.slane %v442, 4
    %v444 = vadd.f32 %v442, %v443
    %v445 = vrot.slane %v444, 2
    %v446 = vadd.f32 %v444, %v445
    %v447 = vrot.slane %v446, 1
    %v448 = vadd.f32 %v446, %v447
    %v449 = vadd.f32 %v401, %v409
    %v450 = vadd.f32 %v449, %v417
    %v451 = vadd.f32 %v450, %v425
    %v452 = vrot.slane %v451, 4
    %v453 = vadd.f32 %v451, %v452
    %v454 = vrot.slane %v453, 2
    %v455 = vadd.f32 %v453, %v454
    %v456 = vrot.slane %v455, 1
    %v457 = vadd.f32 %v455, %v456
    %v458 = vadd.f32 %v402, %v410
    %v459 = vadd.f32 %v458, %v418
    %v460 = vadd.f32 %v459, %v426
    %v461 = vrot.slane %v460, 4
    %v462 = vadd.f32 %v460, %v461
    %v463 = vrot.slane %v462, 2
    %v464 = vadd.f32 %v462, %v463
    %v465 = vrot.slane %v464, 1
    %v466 = vadd.f32 %v464, %v465
    %v467 = vadd.f32 %v403, %v411
    %v468 = vadd.f32 %v467, %v419
    %v469 = vadd.f32 %v468, %v427
    %v470 = vrot.slane %v469, 4
    %v471 = vadd.f32 %v469, %v470
    %v472 = vrot.slane %v471, 2
    %v473 = vadd.f32 %v471, %v472
    %v474 = vrot.slane %v473, 1
    %v475 = vadd.f32 %v473, %v474
    %v476 = vadd.f32 %v404, %v412
    %v477 = vadd.f32 %v476, %v420
    %v478 = vadd.f32 %v477, %v428
    %v479 = vrot.slane %v478, 4
    %v480 = vadd.f32 %v478, %v479
    %v481 = vrot.slane %v480, 2
    %v482 = vadd.f32 %v480, %v481
    %v483 = vrot.slane %v482, 1
    %v484 = vadd.f32 %v482, %v483
    %v485 = vadd.f32 %v405, %v413
    %v486 = vadd.f32 %v485, %v421
    %v487 = vadd.f32 %v486, %v429
    %v488 = vrot.slane %v487, 4
    %v489 = vadd.f32 %v487, %v488
    %v490 = vrot.slane %v489, 2
    %v491 = vadd.f32 %v489, %v490
    %v492 = vrot.slane %v491, 1
    %v493 = vadd.f32 %v491, %v492
    %v494 = vadd.f32 %v406, %v414
    %v495 = vadd.f32 %v494, %v422
    %v496 = vadd.f32 %v495, %v430
    %v497 = vrot.slane %v496, 4
    %v498 = vadd.f32 %v496, %v497
    %v499 = vrot.slane %v498, 2
    %v500 = vadd.f32 %v498, %v499
    %v501 = vrot.slane %v500, 1
    %v502 = vadd.f32 %v500, %v501
    %v503 = vstv %s36
    %v504 = vadd.f32 %v439, %v503
    %v505 = vadd.f32 %v448, %v503
    %v506 = vadd.f32 %v457, %v503
    %v507 = vadd.f32 %v466, %v503
    %v508 = vadd.f32 %v475, %v503
    %v509 = vadd.f32 %v484, %v503
    %v510 = vadd.f32 %v493, %v503
    %v511 = vadd.f32 %v502, %v503
    %v512 = vmul.f32 %v504, 1.442695
    %v513 = vpow.pop %v512
    %v514 = vmul.f32 %v505, 1.442695
    %v515 = vpow.pop %v514
    %v516 = vmul.f32 %v506, 1.442695
    %v517 = vpow.pop %v516
    %v518 = vmul.f32 %v507, 1.442695
    %v519 = vpow.pop %v518
    %v520 = vmul.f32 %v508, 1.442695
    %v521 = vpow.pop %v520
    %v522 = vmul.f32 %v509, 1.442695
    %v523 = vpow.pop %v522
    %v524 = vmul.f32 %v510, 1.442695
    %v525 = vpow.pop %v524
    %v526 = vmul.f32 %v511, 1.442695
    %v527 = vpow.pop %v526
    %528 = vadd.xlane.f32.xlu0 %v513
    %v529 = vpop.xlane.xlu0 %528
    %530 = vadd.xlane.f32.xlu0 %v515
    %v531 = vpop.xlane.xlu0 %530
    %532 = vadd.xlane.f32.xlu0 %v517
    %v533 = vpop.xlane.xlu0 %532
    %534 = vadd.xlane.f32.xlu0 %v519
    %v535 = vpop.xlane.xlu0 %534
    %536 = vadd.xlane.f32.xlu0 %v521
    %v537 = vpop.xlane.xlu0 %536
    %538 = vadd.xlane.f32.xlu0 %v523
    %v539 = vpop.xlane.xlu0 %538
    %540 = vadd.xlane.f32.xlu0 %v525
    %v541 = vpop.xlane.xlu0 %540
    %542 = vadd.xlane.f32.xlu0 %v527
    %v543 = vpop.xlane.xlu0 %542
    %vm544 = vcmask 7168
    %v545 = vsel %vm544, %v529, %v531
    %vm546 = vcmask 15360
    %v547 = vsel %vm546, %v545, %v533
    %vm548 = vcmask 23552
    %v549 = vsel %vm548, %v547, %v535
    %vm550 = vcmask 31744
    %v551 = vsel %vm550, %v549, %v537
    %vm552 = vcmask 39936
    %v553 = vsel %vm552, %v551, %v539
    %vm554 = vcmask 48128
    %v555 = vsel %vm554, %v553, %v541
    %vm556 = vcmask 56320
    %v557 = vsel %vm556, %v555, %v543
    %v558 = vsel %vm123, %v557, 0.0
    %v559 = vstv %s35
    %v560 = vmul.f32 %v559, %v558
    %561 = vst [vmem:[#allocation5] sm:$0x1] %v560
    // Predicated region
    $region26: #{tpu_custom_call.1} parent=1 // pred_check
      _
    $region27: #{tpu_custom_call.1} parent=1 // pred_check_branch
      %563 = sbr.rel (0) target = $region29
    $region28: #{tpu_custom_call.1} parent=1 // pred_region
      %s565 = ssub.s32 16, 16
      %566 = vsyncadd [#allocation3], %s565
      %s568 = sshll.u32 [#allocation5], 4
      %s569 = int_to_ptr.vmem [resolvable:$true] %s568
      %571 = dma.vmem_to_hbm [thread:$0]  %s569, 16, %s5, [#allocation3]
    $region29: #{tpu_custom_call.1} parent=1 // pred_fallthru
      _
    // Predicated region
    $region30: #{tpu_custom_call.1} parent=1 // pred_check
      _
    $region31: #{tpu_custom_call.1} parent=1 // pred_check_branch
      %573 = sbr.rel (0) target = $region33
    $region32: #{tpu_custom_call.1} parent=1 // pred_region
      %574 = dma.done [#allocation3], 16
    $region33: #{tpu_custom_call.1} parent=1 // pred_fallthru
      _
    %575 = vsyncpa [#allocation3], 1
    %576 = vsyncpa [#allocation4], 1

</llo_original>
